<compile_context>
chip_gen: v7x
topology: tpu7x:2x2x1
jax: 0.10.0
libtpu: 0.0.40
codegen_flags: <defaults>
</compile_context>

<pallas_src>
import jax
import jax.numpy as jnp
from jax.experimental import pallas as pl
from jax.experimental.pallas import tpu as pltpu


def hidden_layer_kernel(x_ref, wt_ref, b_ref, o_ref):
    """One (tm, tn) output tile, accumulated in place over the K grid axis.

    x_ref:  (tm, tk) compute-dtype activations tile
    wt_ref: (tk, tn) compute-dtype weight tile, already transposed to (in, out)
    b_ref:  (1,  tn) f32 bias tile
    o_ref:  (tm, tn) f32 output tile; doubles as the accumulator (its block
            index is constant over the K axis, so it stays resident in VMEM)
    """
    k = pl.program_id(2)

    @pl.when(k == 0)
    def _():
        o_ref[...] = jnp.zeros_like(o_ref)

    # MXU matmul, contraction on x dim 1 / wt dim 0 (no transpose needed).
    o_ref[...] += jnp.dot(x_ref[...], wt_ref[...],
                          preferred_element_type=jnp.float32)

    # Epilogue on the final K step only: bias broadcast + tanh.
    @pl.when(k == pl.num_programs(2) - 1)
    def _():
        o_ref[...] = jnp.tanh(o_ref[...] + b_ref[...]).astype(o_ref.dtype)


def _round_up(x, m):
    return ((x + m - 1) // m) * m


def _pick_tile(dim, cap, align):
    """`dim` is a multiple of `align`.  Return the largest multiple-of-align
    divisor of `dim` that is <= cap (bounded tile, no extra padding)."""
    cap = max(align, (cap // align) * align)
    if dim <= cap:
        return dim
    t = cap
    while t > align:
        if dim % t == 0:
            return t
        t -= align
    return align


def hidden_layer(x, weight, bias, *, compute_dtype=jnp.bfloat16,
                 tm_cap=1024, tn_cap=1024, tk_cap=1024):
    """
    x:      (B, H) float32
    weight: (H, H) float32 -- PyTorch nn.Linear weight (out_features, in_features)
    bias:   (H,)   float32
    returns (B, H) float32 = tanh(x @ weight.T + bias)

    Matmul operands run in `compute_dtype` (bf16 by default) with f32
    accumulation; pass compute_dtype=jnp.float32 for exact f32 semantics.
    """
    B, K = x.shape
    N, K_w = weight.shape
    assert K_w == K, "weight in_features must match x feature dim"
    assert bias.shape == (N,)

    # One-time layout work in the wrapper (amortized for a static weight):
    # cast to the MXU-native compute dtype and transpose to (in, out).
    xc = x.astype(compute_dtype)
    wt = weight.astype(compute_dtype).T           # (K, N)
    b2 = bias.astype(jnp.float32).reshape(1, N)

    # Pad to (8, 128)-aligned shapes: lane-dense stores + bounded tile sizes
    # for arbitrary H.  Zero padding is exact (padded tanh(0+0)=0 is sliced off).
    B_pad = _round_up(B, 8)
    K_pad = _round_up(K, 128)
    N_pad = _round_up(N, 128)
    if B_pad != B or K_pad != K:
        xc = jnp.pad(xc, ((0, B_pad - B), (0, K_pad - K)))
    if K_pad != K or N_pad != N:
        wt = jnp.pad(wt, ((0, K_pad - K), (0, N_pad - N)))
    if N_pad != N:
        b2 = jnp.pad(b2, ((0, 0), (0, N_pad - N)))

    tm = _pick_tile(B_pad, tm_cap, 8)      # tm == B_pad whenever it fits ->
    tn = _pick_tile(N_pad, tn_cap, 128)    # weight streamed from HBM once
    tk = _pick_tile(K_pad, tk_cap, 128)

    # v7x megacore: ensure there are >= 2 parallel (i, j) blocks to shard.
    if (B_pad // tm) * (N_pad // tn) < 2:
        if tn >= 256 and tn % 256 == 0:
            tn //= 2
        elif tm >= 16 and tm % 16 == 0:
            tm //= 2

    grid = (B_pad // tm, N_pad // tn, K_pad // tk)
    n_steps = grid[0] * grid[1] * grid[2]

    # Weight stream is the HBM critical path at small batch -> buffer deeper.
    w_spec = pl.BlockSpec((tk, tn), lambda i, j, k: (k, j))
    if n_steps >= 4:
        try:
            w_spec = pl.BlockSpec((tk, tn), lambda i, j, k: (k, j),
                                  pipeline_mode=pl.Buffered(3))
        except TypeError:   # older BlockSpec without pipeline_mode
            pass

    itemsize = jnp.dtype(compute_dtype).itemsize
    cost = pl.CostEstimate(
        flops=2 * B_pad * N_pad * K_pad,
        transcendentals=B_pad * N_pad,
        bytes_accessed=itemsize * (B_pad * K_pad + K_pad * N_pad)
                       + 4 * (N_pad + B_pad * N_pad),
    )

    out = pl.pallas_call(
        hidden_layer_kernel,
        out_shape=jax.ShapeDtypeStruct((B_pad, N_pad), jnp.float32),
        grid=grid,
        in_specs=[
            pl.BlockSpec((tm, tk), lambda i, j, k: (i, k)),   # x
            w_spec,                                           # W.T (in, out)
            pl.BlockSpec((1, tn), lambda i, j, k: (0, j)),    # bias
        ],
        out_specs=pl.BlockSpec((tm, tn), lambda i, j, k: (i, j)),
        compiler_params=pltpu.CompilerParams(
            dimension_semantics=("parallel", "parallel", "arbitrary"),
            vmem_limit_bytes=48 * 1024 * 1024,
        ),
        cost_estimate=cost,
    )(xc, wt, b2)

    if B_pad != B or N_pad != N:
        out = out[:B, :N]
    return out


if __name__ == "__main__":
    key = jax.random.PRNGKey(0)

    def torch_linear_init(k, out_f, in_f):
        kw, kb = jax.random.split(k)
        bound = 1.0 / (in_f ** 0.5)
        w = jax.random.uniform(kw, (out_f, in_f), minval=-bound, maxval=bound,
                               dtype=jnp.float32)
        b = jax.random.uniform(kb, (out_f,), minval=-bound, maxval=bound,
                               dtype=jnp.float32)
        return w, b

    def ref_fn(x, w, b):   # full-precision reference: tanh(x @ W.T + b)
        z = jax.lax.dot_general(x, w, (((1,), (1,)), ((), ())),
                                precision=jax.lax.Precision.HIGHEST)
        return jnp.tanh(z + b)

    # bf16 matmul operands (f32 accumulation) -> compare against the f32
    # reference with a correspondingly loosened tolerance.
    TOL = dict(atol=3e-2, rtol=3e-2)

    # ---- small shape matching the module's demo (hidden_dim=32, batch=8) ---
    k1, k2, k3, k4 = jax.random.split(key, 4)
    H, B = 32, 8
    x = jax.random.normal(k1, (B, H), dtype=jnp.float32)
    w, b = torch_linear_init(k2, H, H)
    out = jax.block_until_ready(hidden_layer(x, w, b))
    assert out.shape == (B, H)
    assert jnp.allclose(out, ref_fn(x, w, b), **TOL)

    # ---- larger, 128-aligned shape: exercises the tiled matmul path --------
    H2, B2 = 1024, 128
    x2 = jax.random.normal(k3, (B2, H2), dtype=jnp.float32)
    w2, b2 = torch_linear_init(k4, H2, H2)
    out2 = jax.block_until_ready(hidden_layer(x2, w2, b2))
    assert out2.shape == (B2, H2)
    assert jnp.allclose(out2, ref_fn(x2, w2, b2), **TOL)

    # ---- unaligned shape: exercises the padding / slicing path -------------
    k5, k6 = jax.random.split(k1)
    H3, B3 = 100, 5
    x3 = jax.random.normal(k5, (B3, H3), dtype=jnp.float32)
    w3, b3 = torch_linear_init(k6, H3, H3)
    out3 = jax.block_until_ready(hidden_layer(x3, w3, b3))
    assert out3.shape == (B3, H3)
    assert jnp.allclose(out3, ref_fn(x3, w3, b3), **TOL)

    print("KERNEL_OK")
</pallas_src>

<mosaic_0001>
module attributes {stable_mosaic.version = 11 : i64} {
  func.func @hidden_layer_kernel(%arg0: i32, %arg1: i32, %arg2: i32, %arg3: memref<8x128xbf16, #tpu.memory_space<vmem>>, %arg4: memref<128x128xbf16, #tpu.memory_space<vmem>>, %arg5: memref<1x128xf32, #tpu.memory_space<vmem>>, %arg6: memref<8x128xf32, #tpu.memory_space<vmem>>) attributes {dimension_semantics = [#tpu.dimension_semantics<parallel>, #tpu.dimension_semantics<parallel>, #tpu.dimension_semantics<arbitrary>], iteration_bounds = array<i64: 1, 1, 1>, scalar_prefetch = 0 : i64, scratch_operands = 0 : i64, tpu.core_type = #tpu.core_type<tc>, window_params = [{transform_indices = @transform_0, window_bounds = array<i64: 8, 128>}, {transform_indices = @transform_1, window_bounds = array<i64: 128, 128>}, {transform_indices = @transform_2, window_bounds = array<i64: 1, 128>}, {transform_indices = @transform_3, window_bounds = array<i64: 8, 128>}]} {
    %c0_i32 = arith.constant 0 : i32
    %0 = arith.cmpi eq, %arg2, %c0_i32 : i32
    %1 = arith.extui %0 : i1 to i32
    %c0_i32_0 = arith.constant 0 : i32
    %2 = arith.cmpi ne, %1, %c0_i32_0 : i32
    scf.if %2 {
      %cst_10 = arith.constant 0.000000e+00 : f32
      %12 = vector.broadcast %cst_10 : f32 to vector<8x128xf32>
      %c0_11 = arith.constant 0 : index
      %c0_12 = arith.constant 0 : index
      %13 = vector.load %arg6[%c0_11, %c0_12] : memref<8x128xf32, #tpu.memory_space<vmem>>, vector<8x128xf32>
      tpu.vector_store %arg6[%c0_11, %c0_12], %12 {strides = array<i32>} : memref<8x128xf32, #tpu.memory_space<vmem>>, vector<8x128xf32>,
    } else {
    }
    %c0 = arith.constant 0 : index
    %c0_1 = arith.constant 0 : index
    %3 = vector.load %arg6[%c0, %c0_1] : memref<8x128xf32, #tpu.memory_space<vmem>>, vector<8x128xf32>
    %c0_2 = arith.constant 0 : index
    %c0_3 = arith.constant 0 : index
    %4 = vector.load %arg3[%c0_2, %c0_3] : memref<8x128xbf16, #tpu.memory_space<vmem>>, vector<8x128xbf16>
    %c0_4 = arith.constant 0 : index
    %c0_5 = arith.constant 0 : index
    %5 = vector.load %arg4[%c0_4, %c0_5] : memref<128x128xbf16, #tpu.memory_space<vmem>>, vector<128x128xbf16>
    %cst = arith.constant dense<0.000000e+00> : vector<8x128xf32>
    %6 = tpu.matmul %4, %5, %cst {dimension_numbers = #tpu.dot_dimension_numbers<[1], [0], [0], [1], [0, 0, 1, 1], [], []>} : vector<8x128xbf16>, vector<128x128xbf16>, vector<8x128xf32> -> vector<8x128xf32>
    %7 = arith.addf %3, %6 : vector<8x128xf32>
    %c0_6 = arith.constant 0 : index
    %c0_7 = arith.constant 0 : index
    %8 = vector.load %arg6[%c0_6, %c0_7] : memref<8x128xf32, #tpu.memory_space<vmem>>, vector<8x128xf32>
    tpu.vector_store %arg6[%c0_6, %c0_7], %7 {strides = array<i32>} : memref<8x128xf32, #tpu.memory_space<vmem>>, vector<8x128xf32>,
    %c0_i32_8 = arith.constant 0 : i32
    %9 = arith.cmpi eq, %arg2, %c0_i32_8 : i32
    %10 = arith.extui %9 : i1 to i32
    %c0_i32_9 = arith.constant 0 : i32
    %11 = arith.cmpi ne, %10, %c0_i32_9 : i32
    scf.if %11 {
      %c0_10 = arith.constant 0 : index
      %c0_11 = arith.constant 0 : index
      %12 = vector.load %arg6[%c0_10, %c0_11] : memref<8x128xf32, #tpu.memory_space<vmem>>, vector<8x128xf32>
      %c0_12 = arith.constant 0 : index
      %c0_13 = arith.constant 0 : index
      %13 = vector.load %arg5[%c0_12, %c0_13] : memref<1x128xf32, #tpu.memory_space<vmem>>, vector<1x128xf32>
      %14 = vector.broadcast %13 : vector<1x128xf32> to vector<8x128xf32>
      %15 = arith.addf %12, %14 : vector<8x128xf32>
      %16 = math.tanh %15 : vector<8x128xf32>
      %c0_14 = arith.constant 0 : index
      %c0_15 = arith.constant 0 : index
      %17 = vector.load %arg6[%c0_14, %c0_15] : memref<8x128xf32, #tpu.memory_space<vmem>>, vector<8x128xf32>
      tpu.vector_store %arg6[%c0_14, %c0_15], %16 {strides = array<i32>} : memref<8x128xf32, #tpu.memory_space<vmem>>, vector<8x128xf32>,
    } else {
    }
    return
  }
  func.func @transform_0(%arg0: i32, %arg1: i32, %arg2: i32) -> (i32, i32) {
    %c0_i32 = arith.constant 0 : i32
    return %arg0, %arg2 : i32, i32
  }
  func.func @transform_1(%arg0: i32, %arg1: i32, %arg2: i32) -> (i32, i32) {
    %c0_i32 = arith.constant 0 : i32
    return %arg2, %arg1 : i32, i32
  }
  func.func @transform_2(%arg0: i32, %arg1: i32, %arg2: i32) -> (i32, i32) {
    %c0_i32 = arith.constant 0 : i32
    %c0_i32_0 = arith.constant 0 : i32
    return %c0_i32, %arg1 : i32, i32
  }
  func.func @transform_3(%arg0: i32, %arg1: i32, %arg2: i32) -> (i32, i32) {
    %c0_i32 = arith.constant 0 : i32
    return %arg0, %arg1 : i32, i32
  }
}

</mosaic_0001>

<llo_original>
// kernel: tpu_custom_call.1
$region0: #{tpu_custom_call.1}
  #allocation0 [shape = 'u32[]', space=smem, size = 0x4, offset = 0x4, fixed_abs, tag = 'smem constant byte address 0x4 - core index']
  #allocation1 [shape = 'u32[144,128]{1,0:T(1,128)}', space=vmem, size = 0x12000, scoped, tag = 'internal scratch']
  %s0 = inlined_call_operand.hbm [shape: bf16[8,128], index: 0, kind: input, shape index: {}]
  %s1 = inlined_call_operand.hbm [shape: bf16[128,128], index: 1, kind: input, shape index: {}]
  %s2 = inlined_call_operand.vmem [shape: f32[1,128], index: 2, kind: input, shape index: {}]
  %s3 = inlined_call_operand.hbm [shape: f32[8,128], index: 3, kind: output, shape index: {}]
  %s4 = sld [smem:[#allocation0]]
  $region38: #{tpu_custom_call.1} parent=0
    _
  %s6 = ssub.s32 1, %s4
  %s7 = scalar_select 0, %s6, %s4
  $region1: #{tpu_custom_call.1} parent=0
    #allocation2 [shape = 'u8[2048]{0}', space=vmem, size = 0x800, scoped, tag = 'input window, operand 0, single buffered']
    #allocation3 [shape = 's32[1]{0}', space=sflag, size = 0x4, scoped, tag = 'scoped memory for tpu_custom_call.1']
    #allocation4 [shape = 's32[1]{0}', space=sflag, size = 0x4, scoped, tag = 'scoped memory for tpu_custom_call.1']
    #allocation5 [shape = 'u8[32768]{0}', space=vmem, size = 0x8000, scoped, tag = 'input window, operand 1, single buffered']
    #allocation6 [shape = 's32[1]{0}', space=sflag, size = 0x4, scoped, tag = 'scoped memory for tpu_custom_call.1']
    #allocation7 [shape = 'u8[4096]{0}', space=vmem, size = 0x1000, scoped, tag = 'output window, operand 0, single buffered']
    %8 = vsyncpa [#allocation3], 0
    %9 = vsyncpa [#allocation6], 0
    %10 = vsyncpa [#allocation4], 0
    // Predicated region
    $region2: #{tpu_custom_call.1} parent=1 // pred_check
      _
    $region3: #{tpu_custom_call.1} parent=1 // pred_check_branch
      %12 = sbr.rel (0) target = $region5
    $region4: #{tpu_custom_call.1} parent=1 // pred_region
      %s14 = ssub.s32 64, 64
      %15 = vsyncadd [#allocation3], %s14
      %s17 = sshll.u32 [#allocation2], 4
      %s18 = int_to_ptr.vmem [resolvable:$true] %s17
      %20 = dma.hbm_to_vmem [thread:$0]  %s0, 64, %s18, [#allocation3]
    $region5: #{tpu_custom_call.1} parent=1 // pred_fallthru
      _
    // Predicated region
    $region6: #{tpu_custom_call.1} parent=1 // pred_check
      _
    $region7: #{tpu_custom_call.1} parent=1 // pred_check_branch
      %22 = sbr.rel (0) target = $region9
    $region8: #{tpu_custom_call.1} parent=1 // pred_region
      %s24 = ssub.s32 1024, 1024
      %25 = vsyncadd [#allocation6], %s24
      %s26 = sshll.u32 [#allocation5], 4
      %s27 = int_to_ptr.vmem [resolvable:$true] %s26
      %32 = dma.hbm_to_vmem [thread:$0]  %s1, 1024, %s27, [#allocation6], 64, 64, 4
    $region9: #{tpu_custom_call.1} parent=1 // pred_fallthru
      _
    // Predicated region
    $region10: #{tpu_custom_call.1} parent=1 // pred_check
      _
    $region11: #{tpu_custom_call.1} parent=1 // pred_check_branch
      %34 = sbr.rel (0) target = $region13
    $region12: #{tpu_custom_call.1} parent=1 // pred_region
      _
    $region13: #{tpu_custom_call.1} parent=1 // pred_fallthru
      _
    // Predicated region
    $region14: #{tpu_custom_call.1} parent=1 // pred_check
      _
    $region15: #{tpu_custom_call.1} parent=1 // pred_check_branch
      %36 = sbr.rel (0) target = $region17
    $region16: #{tpu_custom_call.1} parent=1 // pred_region
      %37 = dma.done [#allocation3], 64
    $region17: #{tpu_custom_call.1} parent=1 // pred_fallthru
      _
    // Predicated region
    $region18: #{tpu_custom_call.1} parent=1 // pred_check
      _
    $region19: #{tpu_custom_call.1} parent=1 // pred_check_branch
      %39 = sbr.rel (0) target = $region21
    $region20: #{tpu_custom_call.1} parent=1 // pred_region
      %40 = dma.done [#allocation6], 1024
    $region21: #{tpu_custom_call.1} parent=1 // pred_fallthru
      _
    %p42 = scmp.eq.s32.totalorder 0, 0
    // Predicated region
    $region22: #{tpu_custom_call.1} parent=1 // pred_check
      %p43 = pneg %p42
    $region23: #{tpu_custom_call.1} parent=1 // pred_check_branch
      %45 = sbr.rel (%p43) target = $region25
    $region24: #{tpu_custom_call.1} parent=1 // pred_region
      %46 = vst [vmem:[#allocation7] sm:$0xff] 0.0
    $region25: #{tpu_custom_call.1} parent=1 // pred_fallthru
      _
    %v47 = vld [vmem:[#allocation7] sm:$0xff]
    %v48 = vld [vmem:[#allocation2] sm:$0xf]
    %v49 = vld [vmem:[#allocation5] sm:$0xf]
    %v50 = vld [vmem:[#allocation5 + $0x4] sm:$0xf]
    %v51 = vld [vmem:[#allocation5 + $0x8] sm:$0xf]
    %v52 = vld [vmem:[#allocation5 + $0xc] sm:$0xf]
    %v53 = vld [vmem:[#allocation5 + $0x10] sm:$0xf]
    %v54 = vld [vmem:[#allocation5 + $0x14] sm:$0xf]
    %v55 = vld [vmem:[#allocation5 + $0x18] sm:$0xf]
    %v56 = vld [vmem:[#allocation5 + $0x1c] sm:$0xf]
    %v57 = vld [vmem:[#allocation5 + $0x20] sm:$0xf]
    %v58 = vld [vmem:[#allocation5 + $0x24] sm:$0xf]
    %v59 = vld [vmem:[#allocation5 + $0x28] sm:$0xf]
    %v60 = vld [vmem:[#allocation5 + $0x2c] sm:$0xf]
    %v61 = vld [vmem:[#allocation5 + $0x30] sm:$0xf]
    %v62 = vld [vmem:[#allocation5 + $0x34] sm:$0xf]
    %v63 = vld [vmem:[#allocation5 + $0x38] sm:$0xf]
    %v64 = vld [vmem:[#allocation5 + $0x3c] sm:$0xf]
    %v81 = vunpack.c.l.b16 %v49
    %v82 = vunpack.c.l.b16 %v50
    %v83 = vunpack.c.l.b16 %v51
    %v84 = vunpack.c.l.b16 %v52
    %v85 = vunpack.c.l.b16 %v53
    %v86 = vunpack.c.l.b16 %v54
    %v87 = vunpack.c.l.b16 %v55
    %v88 = vunpack.c.l.b16 %v56
    %v89 = vunpack.c.l.b16 %v57
    %v90 = vunpack.c.l.b16 %v58
    %v91 = vunpack.c.l.b16 %v59
    %v92 = vunpack.c.l.b16 %v60
    %v93 = vunpack.c.l.b16 %v61
    %v94 = vunpack.c.l.b16 %v62
    %v95 = vunpack.c.l.b16 %v63
    %v96 = vunpack.c.l.b16 %v64
    %v97 = vpack.c.b16 %v82, %v81
    %v98 = vpack.c.b16 %v84, %v83
    %v99 = vpack.c.b16 %v86, %v85
    %v100 = vpack.c.b16 %v88, %v87
    %v101 = vpack.c.b16 %v90, %v89
    %v102 = vpack.c.b16 %v92, %v91
    %v103 = vpack.c.b16 %v94, %v93
    %v104 = vpack.c.b16 %v96, %v95
    %113 = vmatprep.subr.bf16.mxu0 0
    %114 = vmatpush1.bf16.msra.mxu0 %v97
    %115 = vmatprep.subr.bf16.mxu0 0
    %116 = vmatpush1.bf16.msra.mxu0 %v98
    %117 = vmatprep.subr.bf16.mxu0 0
    %118 = vmatpush1.bf16.msra.mxu0 %v99
    %119 = vmatprep.subr.bf16.mxu0 0
    %120 = vmatpush1.bf16.msra.mxu0 %v100
    %121 = vmatprep.subr.bf16.mxu0 0
    %122 = vmatpush1.bf16.msra.mxu0 %v101
    %123 = vmatprep.subr.bf16.mxu0 0
    %124 = vmatpush1.bf16.msra.mxu0 %v102
    %125 = vmatprep.subr.bf16.mxu0 0
    %126 = vmatpush1.bf16.msra.mxu0 %v103
    %127 = vmatprep.subr.bf16.mxu0 0
    %128 = vmatpush1.bf16.msra.mxu0 %v104
    %129 = vmatprep.subr.bf16.mxu0 0
    %130 = vmatpush1.bf16.msra.mxu0 0
    %131 = vmatprep.subr.bf16.mxu0 0
    %132 = vmatpush1.bf16.msra.mxu0 0
    %133 = vmatprep.subr.bf16.mxu0 0
    %134 = vmatpush1.bf16.msra.mxu0 0
    %135 = vmatprep.subr.bf16.mxu0 0
    %136 = vmatpush1.bf16.msra.mxu0 0
    %137 = vmatprep.subr.bf16.mxu0 0
    %138 = vmatpush1.bf16.msra.mxu0 0
    %139 = vmatprep.subr.bf16.mxu0 0
    %140 = vmatpush1.bf16.msra.mxu0 0
    %141 = vmatprep.subr.bf16.mxu0 0
    %142 = vmatpush1.bf16.msra.mxu0 0
    %143 = vmatprep.subr.bf16.mxu0 0
    %144 = vmatpush1.bf16.msra.mxu0 0
    %145 = vmatprep.mubr.bf16.mxu0 0
    %146 = vmatmul.mubr.bf16.gmra.mrb[0].mxu0 %v48
    %v147 = vpop.f32.mrb[0].mxu0
    %v148 = vadd.f32 0.0, %v147
    %v149 = vpop.f32.mrb[0].mxu0
    %v150 = vpop.f32.mrb[0].mxu0
    %v151 = vpop.f32.mrb[0].mxu0
    %152 = vdwg.mxu0
    %v153 = vadd.f32 %v47, %v148
    %154 = vst [vmem:[#allocation7] sm:$0xff] %v153
    // Predicated region
    $region26: #{tpu_custom_call.1} parent=1 // pred_check
      %p155 = pneg %p42
    $region27: #{tpu_custom_call.1} parent=1 // pred_check_branch
      %157 = sbr.rel (%p155) target = $region29
    $region28: #{tpu_custom_call.1} parent=1 // pred_region
      %v158 = vld [vmem:[#allocation7] sm:$0xff]
      %v159 = vld [vmem:[%s2] sm:$0x1]
      %v161 = vlaneseq
      %v162 = vshrl.u32 %v161, 7
      %v163 = vsub.s32 0, %v162
      %v164 = vrot.slane %v159, %v163
      %v166 = vadd.f32 %v158, %v164
      %v167 = vtanh.pop %v166
      %168 = vst [vmem:[#allocation7] sm:$0xff] %v167
    $region29: #{tpu_custom_call.1} parent=1 // pred_fallthru
      _
    // Predicated region
    $region30: #{tpu_custom_call.1} parent=1 // pred_check
      _
    $region31: #{tpu_custom_call.1} parent=1 // pred_check_branch
      %170 = sbr.rel (0) target = $region33
    $region32: #{tpu_custom_call.1} parent=1 // pred_region
      %s172 = ssub.s32 128, 128
      %173 = vsyncadd [#allocation4], %s172
      %s175 = sshll.u32 [#allocation7], 4
      %s176 = int_to_ptr.vmem [resolvable:$true] %s175
      %178 = dma.vmem_to_hbm [thread:$0]  %s176, 128, %s3, [#allocation4]
    $region33: #{tpu_custom_call.1} parent=1 // pred_fallthru
      _
    // Predicated region
    $region34: #{tpu_custom_call.1} parent=1 // pred_check
      _
    $region35: #{tpu_custom_call.1} parent=1 // pred_check_branch
      %180 = sbr.rel (0) target = $region37
    $region36: #{tpu_custom_call.1} parent=1 // pred_region
      %181 = dma.done [#allocation4], 128
    $region37: #{tpu_custom_call.1} parent=1 // pred_fallthru
      _
    %182 = vsyncpa [#allocation3], 1
    %183 = vsyncpa [#allocation6], 1
    %184 = vsyncpa [#allocation4], 1

</llo_original>
